<compile_context>
chip_gen: v7x
topology: tpu7x:2x2x1
jax: 0.10.0
libtpu: 0.0.40
codegen_flags: <defaults>
</compile_context>

<pallas_src>
import jax
import jax.numpy as jnp
from jax.experimental import pallas as pl
from jax.experimental.pallas import tpu as pltpu


def _cdiv(a, b):
    return -(-a // b)


def _round_up(v, m):
    return ((v + m - 1) // m) * m


def _interval_embedding_kernel(x_ref, rep_ref, lo_ref, hi_ref, emb_ref, o_ref):
    """One grid step: (rows_tile, pack) times -> (rows_tile, pack*hidden) embeddings."""
    fmax = jnp.float32(jnp.finfo(jnp.float32).max)
    x = x_ref[...]                                            # (rows_tile, pack) f32
    # NaN sorts past every boundary (torch.bucketize semantics) -> last bin.
    # +/-inf are clamped finite so the 0*x terms of the replication matmul stay exact.
    x = jnp.where(jnp.isnan(x), fmax, jnp.clip(x, -fmax, fmax))

    # Lane-replicate each packed element across its num_bins-wide slot:
    #   x_rep[r, s*num_bins + j] = x[r, s]
    # rep is a 0/1 selection matrix; with HIGHEST precision the f32 value is
    # reconstructed exactly, so boundary comparisons below are exact.
    x_rep = jnp.dot(x, rep_ref[...],
                    precision=jax.lax.Precision.HIGHEST,
                    preferred_element_type=jnp.float32)       # (rows, pack*num_bins)

    # bucketize + clamp fused into interval membership: bin j <=> lo[j] < x <= hi[j],
    # with lo[0] = -inf and hi[num_bins-1] = +inf (exactly one bin fires per element).
    one_hot = jnp.logical_and(x_rep > lo_ref[...], x_rep <= hi_ref[...])
    one_hot = one_hot.astype(jnp.float32)                     # (rows, pack*num_bins)

    # Packed gather on the MXU: block-diagonal table -> lane-dense (rows, 128) output.
    out = jnp.dot(one_hot, emb_ref[...],
                  precision=jax.lax.Precision.HIGHEST,
                  preferred_element_type=jnp.float32)
    o_ref[...] = out.astype(o_ref.dtype)


def learnable_interval_embedding(x, bin_boundaries, emb_weight, *,
                                 rows_per_tile=4096, min_grid_steps=4,
                                 pack=None, out_dtype=None):
    """x: float array of any shape; returns x.shape + (hidden_size,)."""
    num_bins, hidden = emb_weight.shape
    if out_dtype is None:
        out_dtype = emb_weight.dtype
    orig_shape = x.shape

    # Pack `pack` consecutive elements per 128-lane output row so stores are unmasked.
    # (pack=8/16 can help v6e/v7x MXU K-alignment; keep the default on v5e.)
    if pack is None:
        pack = 128 // hidden if (hidden < 128 and 128 % hidden == 0) else 1
    # TODO(synk): hidden values that don't divide 128 fall back to pack=1 -> masked
    # partial stores (correct but slow); a padded-hidden path would fix that.

    flat = jnp.reshape(x, (-1,)).astype(jnp.float32)
    n = flat.shape[0]

    # Pad only to complete packed rows at an 8-row (sublane) granularity -- usually a
    # zero-length pad -> no wrapper-side HBM copy for typical shapes.
    q = _round_up(_cdiv(n, pack), 8)                          # packed rows (array rows)
    n_pad = q * pack
    if n_pad != n:
        flat = jnp.pad(flat, (0, n_pad - n))                  # tail -> emb[bin of 0.0], sliced off
    x_packed = flat.reshape(q, pack)

    # Tile geometry: big tiles to amortize per-step overhead, but keep >= min_grid_steps
    # grid iterations so the "parallel" axis distributes across both v7x TensorCores.
    rows_tile = max(8, min(rows_per_tile, _round_up(_cdiv(q, min_grid_steps), 8)))
    if jnp.dtype(out_dtype).itemsize == 2:
        rows_tile = _round_up(rows_tile, 16)                  # bf16 sublane packing
    grid = (_cdiv(q, rows_tile),)                             # partial last block OK

    # --- tiny constants (fuse into the jitted program; constant index_map => resident) --
    bnd = bin_boundaries.astype(jnp.float32)                  # (num_bins + 1,)
    neg_inf = jnp.array([-jnp.inf], jnp.float32)
    pos_inf = jnp.array([jnp.inf], jnp.float32)
    lo = jnp.concatenate([neg_inf, bnd[1:num_bins]])          # exclusive lower edges
    hi = jnp.concatenate([bnd[1:num_bins], pos_inf])          # inclusive upper edges
    lo_vec = jnp.tile(lo, pack).reshape(1, pack * num_bins)
    hi_vec = jnp.tile(hi, pack).reshape(1, pack * num_bins)

    # 0/1 lane-replication matrix: x_rep[:, s*num_bins + j] = x[:, s].
    col_slot = jnp.arange(pack * num_bins, dtype=jnp.int32) // num_bins
    rep = (jnp.arange(pack, dtype=jnp.int32)[:, None] == col_slot[None, :])
    rep = rep.astype(jnp.float32)                             # (pack, pack*num_bins)

    # Block-diagonal packed table: row p*num_bins+b, cols [p*hidden, (p+1)*hidden) = emb[b].
    emb_f32 = emb_weight.astype(jnp.float32)
    eye = jnp.eye(pack, dtype=jnp.float32)
    emb_packed = jnp.einsum("pq,bh->pbqh", eye, emb_f32).reshape(
        pack * num_bins, pack * hidden)
    # -------------------------------------------------------------------------------------

    out = pl.pallas_call(
        _interval_embedding_kernel,
        out_shape=jax.ShapeDtypeStruct((q, pack * hidden), out_dtype),
        grid_spec=pltpu.PrefetchScalarGridSpec(
            num_scalar_prefetch=0,
            grid=grid,
            in_specs=[
                pl.BlockSpec((rows_tile, pack), lambda i: (i, 0)),                 # x rows
                pl.BlockSpec((pack, pack * num_bins), lambda i: (0, 0)),           # replication
                pl.BlockSpec((1, pack * num_bins), lambda i: (0, 0)),              # lo edges
                pl.BlockSpec((1, pack * num_bins), lambda i: (0, 0)),              # hi edges
                pl.BlockSpec((pack * num_bins, pack * hidden), lambda i: (0, 0)),  # table
            ],
            out_specs=pl.BlockSpec((rows_tile, pack * hidden), lambda i: (i, 0)),
        ),
        # "parallel" so the row axis shards across the two v7x TensorCores.
        compiler_params=pltpu.CompilerParams(dimension_semantics=("parallel",)),
    )(x_packed, rep, lo_vec, hi_vec, emb_packed)

    # Un-pack: pure reshape (packing used consecutive elements -> no transpose).
    out = out.reshape(q * pack, hidden)
    if n_pad != n:                                            # only slice when padded
        out = out[:n]
    return out.reshape(orig_shape + (hidden,))


def _reference(x, bin_boundaries, emb_weight):
    num_bins = emb_weight.shape[0]
    idx = jnp.searchsorted(bin_boundaries, x, side="left") - 1
    idx = jnp.clip(idx, 0, num_bins - 1)
    return emb_weight[idx]


if __name__ == "__main__":
    # Module hyperparameters (small, matching the PyTorch module defaults).
    num_bins = 16
    hidden_size = 32
    min_time, max_time = 0.0, 100.0

    key = jax.random.PRNGKey(0)
    k_emb, k_x1, k_x2 = jax.random.split(key, 3)

    bin_boundaries = jnp.linspace(min_time, max_time, num_bins + 1, dtype=jnp.float32)
    emb_weight = jax.random.normal(k_emb, (num_bins, hidden_size), dtype=jnp.float32)

    # Run the whole wrapper under jit so the tiny constant ops fuse with the kernel.
    fwd = jax.jit(learnable_interval_embedding,
                  static_argnames=("rows_per_tile", "min_grid_steps", "pack", "out_dtype"))

    # Case 1: small shape (batch=2, seq=8) with out-of-range values to exercise clamping.
    x_small = jax.random.uniform(k_x1, (2, 8), dtype=jnp.float32, minval=-10.0, maxval=110.0)
    out_small = jax.block_until_ready(fwd(x_small, bin_boundaries, emb_weight))
    ref_small = _reference(x_small, bin_boundaries, emb_weight)
    assert out_small.shape == (2, 8, hidden_size), out_small.shape
    assert jnp.allclose(out_small, ref_small, atol=1e-5), "small-case mismatch vs reference"

    # Case 2: multi-step grid (4 tiles), a partial last block, and tail padding/slicing.
    x_big = jax.random.uniform(k_x2, (3, 1500), dtype=jnp.float32, minval=-10.0, maxval=110.0)
    out_big = jax.block_until_ready(
        fwd(x_big, bin_boundaries, emb_weight, rows_per_tile=512))
    ref_big = _reference(x_big, bin_boundaries, emb_weight)
    assert out_big.shape == (3, 1500, hidden_size), out_big.shape
    assert jnp.allclose(out_big, ref_big, atol=1e-5), "multi-tile mismatch vs reference"

    # NOTE: for production benchmarking, compare achieved GB/s against the HBM write
    # roofline (bytes ~= N*(4 + hidden*4)) using min-of-3 xprof timings, not
    # time.perf_counter().  Not done here to keep the script hermetic.
    print("KERNEL_OK")
</pallas_src>

<mosaic_0001>
module attributes {stable_mosaic.version = 11 : i64} {
  func.func @_interval_embedding_kernel(%arg0: i32, %arg1: memref<8x4xf32, #tpu.memory_space<vmem>>, %arg2: memref<4x64xf32, #tpu.memory_space<vmem>>, %arg3: memref<1x64xf32, #tpu.memory_space<vmem>>, %arg4: memref<1x64xf32, #tpu.memory_space<vmem>>, %arg5: memref<64x128xf32, #tpu.memory_space<vmem>>, %arg6: memref<8x128xf32, #tpu.memory_space<vmem>>) attributes {dimension_semantics = [#tpu.dimension_semantics<parallel>], iteration_bounds = array<i64: 1>, scalar_prefetch = 0 : i64, scratch_operands = 0 : i64, tpu.core_type = #tpu.core_type<tc>, window_params = [{transform_indices = @transform_0, window_bounds = array<i64: 8, 4>}, {pipeline_mode = #tpu.pipeline_mode<synchronous>, transform_indices = @transform_1, window_bounds = array<i64: 4, 64>}, {pipeline_mode = #tpu.pipeline_mode<synchronous>, transform_indices = @transform_2, window_bounds = array<i64: 1, 64>}, {pipeline_mode = #tpu.pipeline_mode<synchronous>, transform_indices = @transform_3, window_bounds = array<i64: 1, 64>}, {pipeline_mode = #tpu.pipeline_mode<synchronous>, transform_indices = @transform_4, window_bounds = array<i64: 64, 128>}, {transform_indices = @transform_5, window_bounds = array<i64: 8, 128>}]} {
    %c0 = arith.constant 0 : index
    %c0_0 = arith.constant 0 : index
    %0 = vector.load %arg1[%c0, %c0_0] : memref<8x4xf32, #tpu.memory_space<vmem>>, vector<8x4xf32>
    %1 = arith.cmpf one, %0, %0 : vector<8x4xf32>
    %cst = arith.constant 0.000000e+00 : f32
    %cst_1 = arith.constant 3.40282347E+38 : f32
    %2 = arith.subf %cst, %cst_1 : f32
    %cst_2 = arith.constant 3.40282347E+38 : f32
    %3 = vector.broadcast %2 : f32 to vector<8x4xf32>
    %4 = arith.maximumf %3, %0 : vector<8x4xf32>
    %5 = vector.broadcast %cst_2 : f32 to vector<8x4xf32>
    %6 = arith.minimumf %5, %4 : vector<8x4xf32>
    %cst_3 = arith.constant 3.40282347E+38 : f32
    %7 = vector.broadcast %cst_3 : f32 to vector<8x4xf32>
    %8 = arith.select %1, %7, %6 : vector<8x4xi1>, vector<8x4xf32>
    %c0_4 = arith.constant 0 : index
    %c0_5 = arith.constant 0 : index
    %9 = vector.load %arg2[%c0_4, %c0_5] : memref<4x64xf32, #tpu.memory_space<vmem>>, vector<4x64xf32>
    %cst_6 = arith.constant dense<0.000000e+00> : vector<8x64xf32>
    %10 = tpu.matmul %8, %9, %cst_6 {dimension_numbers = #tpu.dot_dimension_numbers<[1], [0], [0], [1], [0, 0, 1, 1], [], []>, precision = #tpu.contract_precision<fp32>} : vector<8x4xf32>, vector<4x64xf32>, vector<8x64xf32> -> vector<8x64xf32>
    %c0_7 = arith.constant 0 : index
    %c0_8 = arith.constant 0 : index
    %11 = vector.load %arg3[%c0_7, %c0_8] : memref<1x64xf32, #tpu.memory_space<vmem>>, vector<1x64xf32>
    %12 = vector.broadcast %11 : vector<1x64xf32> to vector<8x64xf32>
    %13 = arith.cmpf ogt, %10, %12 : vector<8x64xf32>
    %c0_9 = arith.constant 0 : index
    %c0_10 = arith.constant 0 : index
    %14 = vector.load %arg4[%c0_9, %c0_10] : memref<1x64xf32, #tpu.memory_space<vmem>>, vector<1x64xf32>
    %15 = vector.broadcast %14 : vector<1x64xf32> to vector<8x64xf32>
    %16 = arith.cmpf ole, %10, %15 : vector<8x64xf32>
    %17 = arith.andi %13, %16 : vector<8x64xi1>
    %18 = arith.extui %17 : vector<8x64xi1> to vector<8x64xi32>
    %19 = arith.sitofp %18 : vector<8x64xi32> to vector<8x64xf32>
    %c0_11 = arith.constant 0 : index
    %c0_12 = arith.constant 0 : index
    %20 = vector.load %arg5[%c0_11, %c0_12] : memref<64x128xf32, #tpu.memory_space<vmem>>, vector<64x128xf32>
    %cst_13 = arith.constant dense<0.000000e+00> : vector<8x128xf32>
    %21 = tpu.matmul %19, %20, %cst_13 {dimension_numbers = #tpu.dot_dimension_numbers<[1], [0], [0], [1], [0, 0, 1, 1], [], []>, precision = #tpu.contract_precision<fp32>} : vector<8x64xf32>, vector<64x128xf32>, vector<8x128xf32> -> vector<8x128xf32>
    %c0_14 = arith.constant 0 : index
    %c0_15 = arith.constant 0 : index
    %22 = vector.load %arg6[%c0_14, %c0_15] : memref<8x128xf32, #tpu.memory_space<vmem>>, vector<8x128xf32>
    tpu.vector_store %arg6[%c0_14, %c0_15], %21 {strides = array<i32>} : memref<8x128xf32, #tpu.memory_space<vmem>>, vector<8x128xf32>,
    return
  }
  func.func @transform_0(%arg0: i32) -> (i32, i32) {
    %c0_i32 = arith.constant 0 : i32
    %c0_i32_0 = arith.constant 0 : i32
    return %arg0, %c0_i32 : i32, i32
  }
  func.func @transform_1(%arg0: i32) -> (i32, i32) {
    %c0_i32 = arith.constant 0 : i32
    %c0_i32_0 = arith.constant 0 : i32
    %c0_i32_1 = arith.constant 0 : i32
    return %c0_i32, %c0_i32_0 : i32, i32
  }
  func.func @transform_2(%arg0: i32) -> (i32, i32) {
    %c0_i32 = arith.constant 0 : i32
    %c0_i32_0 = arith.constant 0 : i32
    %c0_i32_1 = arith.constant 0 : i32
    return %c0_i32, %c0_i32_0 : i32, i32
  }
  func.func @transform_3(%arg0: i32) -> (i32, i32) {
    %c0_i32 = arith.constant 0 : i32
    %c0_i32_0 = arith.constant 0 : i32
    %c0_i32_1 = arith.constant 0 : i32
    return %c0_i32, %c0_i32_0 : i32, i32
  }
  func.func @transform_4(%arg0: i32) -> (i32, i32) {
    %c0_i32 = arith.constant 0 : i32
    %c0_i32_0 = arith.constant 0 : i32
    %c0_i32_1 = arith.constant 0 : i32
    return %c0_i32, %c0_i32_0 : i32, i32
  }
  func.func @transform_5(%arg0: i32) -> (i32, i32) {
    %c0_i32 = arith.constant 0 : i32
    %c0_i32_0 = arith.constant 0 : i32
    return %arg0, %c0_i32 : i32, i32
  }
}

</mosaic_0001>

<llo_original>
// kernel: tile.13
$region0: #{tile.13}
  #allocation0 [shape = 's32[1]{0}', space=sflag, size = 0x4, scoped, tag = 'scoped memory for tile.13']
  %s0 = inlined_call_operand.vmem [shape: f32[16], index: 0, kind: input, shape index: {}]
  %s1 = inlined_call_operand.vmem [shape: f32[4,16], index: 1, kind: output, shape index: {}]
  // Predicated region
  $region2: #{tile.13} parent=0 // pred_check
    _
  $region3: #{tile.13} parent=0 // pred_check_branch
    %3 = sbr.rel (0) target = $region5
  $region4: #{tile.13} parent=0 // pred_region
    _
  $region5: #{tile.13} parent=0 // pred_fallthru
    _
  %v4 = vld [vmem:[%s0] ss:$0 sm:$0xff]
  %5 = vst [vmem:[%s1] sm:$0xf] %v4

// kernel: tile.14
$region0: #{tile.14}
  %s0 = inlined_call_operand.vmem [shape: f32[4,16], index: 0, kind: input, shape index: {}]
  %s1 = inlined_call_operand.vmem [shape: f32[1,64], index: 1, kind: output, shape index: {}]
  $region1: #{tile.14} parent=0
    #allocation0 [shape = 'u8[4096]{0}', space=vmem, size = 0x1000, scoped, tag = 'scoped mem for output reshape']
    #allocation1 [shape = 'u8[4096]{0}', space=vmem, size = 0x1000, scoped, tag = 'scoped mem for input reshape']
    %s3 = sshllo.u32 0, 4
    %v4 = vld [vmem:[%s0] sm:%s3]
    %5 = vst [vmem:[#allocation1] sm:%s3] %v4
    %v6 = vld [vmem:[#allocation1] sm:$0x1]
    %vm7 = vcmask 130048
    %8 = vst.msk [vmem:[#allocation0] sm:$0x1] %vm7, %v6
    %s9 = scalar_lea.vmem [#allocation1], 3
    %v10 = vld [vmem:[%s9] sm:$0x1]
    %11 = vrot.lane.b32.xlu0 %v10, 48
    %v12 = vpop.permute.xlu0 %11
    %vm13 = vcmask 523648
    %14 = vst.msk [vmem:[#allocation0] sm:$0x1] %vm13, %v12
    %s15 = scalar_lea.vmem [#allocation1], 2
    %v16 = vld [vmem:[%s15] sm:$0x1]
    %17 = vrot.lane.b32.xlu0 %v16, 32
    %v18 = vpop.permute.xlu0 %17
    %vm19 = vcmask 392448
    %20 = vst.msk [vmem:[#allocation0] sm:$0x1] %vm19, %v18
    %s21 = scalar_lea.vmem [#allocation1], 1
    %v22 = vld [vmem:[%s21] sm:$0x1]
    %23 = vrot.lane.b32.xlu0 %v22, 16
    %v24 = vpop.permute.xlu0 %23
    %vm25 = vcmask 261248
    %26 = vst.msk [vmem:[#allocation0] sm:$0x1] %vm25, %v24
    %s28 = sshllo.u32 0, 1
    %v30 = vld [vmem:[#allocation0] sm:%s28]
    %s31 = sshllo.u32 0, 1
    %32 = vst [vmem:[%s1] sm:%s31] %v30

// kernel: learnable_interval_embedding.1
$region0: #{learnable_interval_embedding.1}
  #allocation0 [shape = 'u32[]', space=smem, size = 0x4, offset = 0x4, fixed_abs, tag = 'smem constant byte address 0x4 - core index']
  #allocation1 [shape = 'u32[144,128]{1,0:T(1,128)}', space=vmem, size = 0x12000, scoped, tag = 'internal scratch']
  %s0 = inlined_call_operand.vmem [shape: f32[8,4], index: 0, kind: input, shape index: {}]
  %s1 = inlined_call_operand.vmem [shape: f32[4,64], index: 1, kind: input, shape index: {}]
  %s2 = inlined_call_operand.vmem [shape: f32[1,64], index: 2, kind: input, shape index: {}]
  %s3 = inlined_call_operand.vmem [shape: f32[1,64], index: 3, kind: input, shape index: {}]
  %s4 = inlined_call_operand.vmem [shape: f32[64,128], index: 4, kind: input, shape index: {}]
  %s5 = inlined_call_operand.vmem [shape: f32[8,128], index: 5, kind: output, shape index: {}]
  %s6 = sld [smem:[#allocation0]]
  $region30: #{learnable_interval_embedding.1} parent=0
    _
  %s8 = ssub.s32 1, %s6
  %s9 = scalar_select 0, %s8, %s6
  // Predicated region
  $region2: #{learnable_interval_embedding.1} parent=0 // pred_check
    _
  $region3: #{learnable_interval_embedding.1} parent=0 // pred_check_branch
    %11 = sbr.rel (0) target = $region5
  $region4: #{learnable_interval_embedding.1} parent=0 // pred_region
    _
  $region5: #{learnable_interval_embedding.1} parent=0 // pred_fallthru
    _
  // Predicated region
  $region6: #{learnable_interval_embedding.1} parent=0 // pred_check
    _
  $region7: #{learnable_interval_embedding.1} parent=0 // pred_check_branch
    %13 = sbr.rel (0) target = $region9
  $region8: #{learnable_interval_embedding.1} parent=0 // pred_region
    _
  $region9: #{learnable_interval_embedding.1} parent=0 // pred_fallthru
    _
  // Predicated region
  $region10: #{learnable_interval_embedding.1} parent=0 // pred_check
    _
  $region11: #{learnable_interval_embedding.1} parent=0 // pred_check_branch
    %15 = sbr.rel (0) target = $region13
  $region12: #{learnable_interval_embedding.1} parent=0 // pred_region
    _
  $region13: #{learnable_interval_embedding.1} parent=0 // pred_fallthru
    _
  // Predicated region
  $region14: #{learnable_interval_embedding.1} parent=0 // pred_check
    _
  $region15: #{learnable_interval_embedding.1} parent=0 // pred_check_branch
    %17 = sbr.rel (0) target = $region17
  $region16: #{learnable_interval_embedding.1} parent=0 // pred_region
    _
  $region17: #{learnable_interval_embedding.1} parent=0 // pred_fallthru
    _
  // Predicated region
  $region18: #{learnable_interval_embedding.1} parent=0 // pred_check
    _
  $region19: #{learnable_interval_embedding.1} parent=0 // pred_check_branch
    %19 = sbr.rel (0) target = $region21
  $region20: #{learnable_interval_embedding.1} parent=0 // pred_region
    _
  $region21: #{learnable_interval_embedding.1} parent=0 // pred_fallthru
    _
  %v20 = vld [vmem:[%s0] sm:$0xff]
  %vm21 = vcmp.ne.f32.partialorder %v20, %v20
  %v22 = vmax.f32 %v20, -3.4028235e+38
  %v23 = vmin.f32 %v22, 3.4028235e+38
  %v24 = vsel %vm21, 3.4028235e+38, %v23
  %v25 = vld [vmem:[%s1] sm:$0xf]
  %vm26 = vcmask 31744
  %v28 = vsel %vm26, %v24, 0
  %vm30 = vcmask 1043456
  %v32 = vsel %vm30, %v25, 0
  %34 = vmatprep.subr.mxu0 0.0
  %v35 = vand.u32 %v32, 4294901760
  %36 = vmatpush1.msra.mxu0 %v35
  %37 = vmatprep.subr.mxu0 0.0
  %38 = vmatpush1.msra.mxu0 0.0
  %39 = vmatprep.subr.mxu0 0.0
  %40 = vmatpush1.msra.mxu0 0.0
  %41 = vmatprep.subr.mxu0 0.0
  %42 = vmatpush1.msra.mxu0 0.0
  %43 = vmatprep.subr.mxu0 0.0
  %44 = vmatpush1.msra.mxu0 0.0
  %45 = vmatprep.subr.mxu0 0.0
  %46 = vmatpush1.msra.mxu0 0.0
  %47 = vmatprep.subr.mxu0 0.0
  %48 = vmatpush1.msra.mxu0 0.0
  %49 = vmatprep.subr.mxu0 0.0
  %50 = vmatpush1.msra.mxu0 0.0
  %51 = vmatprep.subr.mxu0 0.0
  %52 = vmatpush1.msra.mxu0 0.0
  %53 = vmatprep.subr.mxu0 0.0
  %54 = vmatpush1.msra.mxu0 0.0
  %55 = vmatprep.subr.mxu0 0.0
  %56 = vmatpush1.msra.mxu0 0.0
  %57 = vmatprep.subr.mxu0 0.0
  %58 = vmatpush1.msra.mxu0 0.0
  %59 = vmatprep.subr.mxu0 0.0
  %60 = vmatpush1.msra.mxu0 0.0
  %61 = vmatprep.subr.mxu0 0.0
  %62 = vmatpush1.msra.mxu0 0.0
  %63 = vmatprep.subr.mxu0 0.0
  %64 = vmatpush1.msra.mxu0 0.0
  %65 = vmatprep.subr.mxu0 0.0
  %66 = vmatpush1.msra.mxu0 0.0
  %67 = vmatprep.subr.mxu0 0.0
  %68 = vmatpush1.msra.mxu0 0.0
  %69 = vmatprep.subr.mxu0 0.0
  %70 = vmatpush1.msra.mxu0 0.0
  %71 = vmatprep.subr.mxu0 0.0
  %72 = vmatpush1.msra.mxu0 0.0
  %73 = vmatprep.subr.mxu0 0.0
  %74 = vmatpush1.msra.mxu0 0.0
  %75 = vmatprep.subr.mxu0 0.0
  %76 = vmatpush1.msra.mxu0 0.0
  %77 = vmatprep.subr.mxu0 0.0
  %78 = vmatpush1.msra.mxu0 0.0
  %79 = vmatprep.subr.mxu0 0.0
  %80 = vmatpush1.msra.mxu0 0.0
  %81 = vmatprep.subr.mxu0 0.0
  %82 = vmatpush1.msra.mxu0 0.0
  %83 = vmatprep.subr.mxu0 0.0
  %84 = vmatpush1.msra.mxu0 0.0
  %85 = vmatprep.subr.mxu0 0.0
  %86 = vmatpush1.msra.mxu0 0.0
  %87 = vmatprep.subr.mxu0 0.0
  %88 = vmatpush1.msra.mxu0 0.0
  %89 = vmatprep.subr.mxu0 0.0
  %90 = vmatpush1.msra.mxu0 0.0
  %91 = vmatprep.subr.mxu0 0.0
  %92 = vmatpush1.msra.mxu0 0.0
  %93 = vmatprep.subr.mxu0 0.0
  %94 = vmatpush1.msra.mxu0 0.0
  %95 = vmatprep.subr.mxu0 0.0
  %96 = vmatpush1.msra.mxu0 0.0
  %97 = vmatprep.subr.mxu0 0.0
  %98 = vmatpush1.msra.mxu0 0.0
  %99 = vmatprep.mubr.f32.mxu0 0.0
  %v100 = vand.u32 %v28, 4294901760
  %v101 = vsub.f32 %v28, %v100
  %v102 = vand.u32 %v101, 4294901760
  %v103 = vsub.f32 %v101, %v102
  %v104 = vand.u32 %v103, 4294901760
  %105 = vmatmul.mubr.f32.gmra.mrb[0].mxu0 %v104
  %v106 = vpop.f32.mrb[0].mxu0
  %v107 = vadd.f32 0.0, %v106
  %v108 = vpop.f32.mrb[0].mxu0
  %109 = vdwg.mxu0
  %110 = vmatprep.subr.mxu0 0.0
  %v111 = vand.u32 %v32, 4294901760
  %v112 = vsub.f32 %v32, %v111
  %v113 = vand.u32 %v112, 4294901760
  %v114 = vsub.f32 %v112, %v113
  %v115 = vand.u32 %v114, 4294901760
  %116 = vmatpush1.msra.mxu0 %v115
  %117 = vmatprep.subr.mxu0 0.0
  %118 = vmatpush1.msra.mxu0 0.0
  %119 = vmatprep.subr.mxu0 0.0
  %120 = vmatpush1.msra.mxu0 0.0
  %121 = vmatprep.subr.mxu0 0.0
  %122 = vmatpush1.msra.mxu0 0.0
  %123 = vmatprep.subr.mxu0 0.0
  %124 = vmatpush1.msra.mxu0 0.0
  %125 = vmatprep.subr.mxu0 0.0
  %126 = vmatpush1.msra.mxu0 0.0
  %127 = vmatprep.subr.mxu0 0.0
  %128 = vmatpush1.msra.mxu0 0.0
  %129 = vmatprep.subr.mxu0 0.0
  %130 = vmatpush1.msra.mxu0 0.0
  %131 = vmatprep.subr.mxu0 0.0
  %132 = vmatpush1.msra.mxu0 0.0
  %133 = vmatprep.subr.mxu0 0.0
  %134 = vmatpush1.msra.mxu0 0.0
  %135 = vmatprep.subr.mxu0 0.0
  %136 = vmatpush1.msra.mxu0 0.0
  %137 = vmatprep.subr.mxu0 0.0
  %138 = vmatpush1.msra.mxu0 0.0
  %139 = vmatprep.subr.mxu0 0.0
  %140 = vmatpush1.msra.mxu0 0.0
  %141 = vmatprep.subr.mxu0 0.0
  %142 = vmatpush1.msra.mxu0 0.0
  %143 = vmatprep.subr.mxu0 0.0
  %144 = vmatpush1.msra.mxu0 0.0
  %145 = vmatprep.subr.mxu0 0.0
  %146 = vmatpush1.msra.mxu0 0.0
  %147 = vmatprep.subr.mxu0 0.0
  %148 = vmatpush1.msra.mxu0 0.0
  %149 = vmatprep.subr.mxu0 0.0
  %150 = vmatpush1.msra.mxu0 0.0
  %151 = vmatprep.subr.mxu0 0.0
  %152 = vmatpush1.msra.mxu0 0.0
  %153 = vmatprep.subr.mxu0 0.0
  %154 = vmatpush1.msra.mxu0 0.0
  %155 = vmatprep.subr.mxu0 0.0
  %156 = vmatpush1.msra.mxu0 0.0
  %157 = vmatprep.subr.mxu0 0.0
  %158 = vmatpush1.msra.mxu0 0.0
  %159 = vmatprep.subr.mxu0 0.0
  %160 = vmatpush1.msra.mxu0 0.0
  %161 = vmatprep.subr.mxu0 0.0
  %162 = vmatpush1.msra.mxu0 0.0
  %163 = vmatprep.subr.mxu0 0.0
  %164 = vmatpush1.msra.mxu0 0.0
  %165 = vmatprep.subr.mxu0 0.0
  %166 = vmatpush1.msra.mxu0 0.0
  %167 = vmatprep.subr.mxu0 0.0
  %168 = vmatpush1.msra.mxu0 0.0
  %169 = vmatprep.subr.mxu0 0.0
  %170 = vmatpush1.msra.mxu0 0.0
  %171 = vmatprep.subr.mxu0 0.0
  %172 = vmatpush1.msra.mxu0 0.0
  %173 = vmatprep.subr.mxu0 0.0
  %174 = vmatpush1.msra.mxu0 0.0
  %175 = vmatprep.subr.mxu0 0.0
  %176 = vmatpush1.msra.mxu0 0.0
  %177 = vmatprep.subr.mxu0 0.0
  %178 = vmatpush1.msra.mxu0 0.0
  %179 = vmatprep.mubr.f32.mxu0 0.0
  %v180 = vand.u32 %v28, 4294901760
  %181 = vmatmul.mubr.f32.gmra.mrb[0].mxu0 %v180
  %v182 = vpop.f32.mrb[0].mxu0
  %v183 = vadd.f32 %v107, %v182
  %v184 = vpop.f32.mrb[0].mxu0
  %185 = vdwg.mxu0
  %186 = vmatprep.subr.mxu0 0.0
  %v187 = vand.u32 %v32, 4294901760
  %v188 = vsub.f32 %v32, %v187
  %189 = vmatpush1.msra.mxu0 %v188
  %190 = vmatprep.subr.mxu0 0.0
  %191 = vmatpush1.msra.mxu0 0.0
  %192 = vmatprep.subr.mxu0 0.0
  %193 = vmatpush1.msra.mxu0 0.0
  %194 = vmatprep.subr.mxu0 0.0
  %195 = vmatpush1.msra.mxu0 0.0
  %196 = vmatprep.subr.mxu0 0.0
  %197 = vmatpush1.msra.mxu0 0.0
  %198 = vmatprep.subr.mxu0 0.0
  %199 = vmatpush1.msra.mxu0 0.0
  %200 = vmatprep.subr.mxu0 0.0
  %201 = vmatpush1.msra.mxu0 0.0
  %202 = vmatprep.subr.mxu0 0.0
  %203 = vmatpush1.msra.mxu0 0.0
  %204 = vmatprep.subr.mxu0 0.0
  %205 = vmatpush1.msra.mxu0 0.0
  %206 = vmatprep.subr.mxu0 0.0
  %207 = vmatpush1.msra.mxu0 0.0
  %208 = vmatprep.subr.mxu0 0.0
  %209 = vmatpush1.msra.mxu0 0.0
  %210 = vmatprep.subr.mxu0 0.0
  %211 = vmatpush1.msra.mxu0 0.0
  %212 = vmatprep.subr.mxu0 0.0
  %213 = vmatpush1.msra.mxu0 0.0
  %214 = vmatprep.subr.mxu0 0.0
  %215 = vmatpush1.msra.mxu0 0.0
  %216 = vmatprep.subr.mxu0 0.0
  %217 = vmatpush1.msra.mxu0 0.0
  %218 = vmatprep.subr.mxu0 0.0
  %219 = vmatpush1.msra.mxu0 0.0
  %220 = vmatprep.subr.mxu0 0.0
  %221 = vmatpush1.msra.mxu0 0.0
  %222 = vmatprep.subr.mxu0 0.0
  %223 = vmatpush1.msra.mxu0 0.0
  %224 = vmatprep.subr.mxu0 0.0
  %225 = vmatpush1.msra.mxu0 0.0
  %226 = vmatprep.subr.mxu0 0.0
  %227 = vmatpush1.msra.mxu0 0.0
  %228 = vmatprep.subr.mxu0 0.0
  %229 = vmatpush1.msra.mxu0 0.0
  %230 = vmatprep.subr.mxu0 0.0
  %231 = vmatpush1.msra.mxu0 0.0
  %232 = vmatprep.subr.mxu0 0.0
  %233 = vmatpush1.msra.mxu0 0.0
  %234 = vmatprep.subr.mxu0 0.0
  %235 = vmatpush1.msra.mxu0 0.0
  %236 = vmatprep.subr.mxu0 0.0
  %237 = vmatpush1.msra.mxu0 0.0
  %238 = vmatprep.subr.mxu0 0.0
  %239 = vmatpush1.msra.mxu0 0.0
  %240 = vmatprep.subr.mxu0 0.0
  %241 = vmatpush1.msra.mxu0 0.0
  %242 = vmatprep.subr.mxu0 0.0
  %243 = vmatpush1.msra.mxu0 0.0
  %244 = vmatprep.subr.mxu0 0.0
  %245 = vmatpush1.msra.mxu0 0.0
  %246 = vmatprep.subr.mxu0 0.0
  %247 = vmatpush1.msra.mxu0 0.0
  %248 = vmatprep.subr.mxu0 0.0
  %249 = vmatpush1.msra.mxu0 0.0
  %250 = vmatprep.subr.mxu0 0.0
  %251 = vmatpush1.msra.mxu0 0.0
  %252 = vmatprep.mubr.f32.mxu0 0.0
  %v253 = vand.u32 %v28, 4294901760
  %v254 = vsub.f32 %v28, %v253
  %255 = vmatmul.mubr.f32.gmra.mrb[0].mxu0 %v254
  %v256 = vpop.f32.mrb[0].mxu0
  %v257 = vadd.f32 %v183, %v256
  %v258 = vpop.f32.mrb[0].mxu0
  %259 = vdwg.mxu0
  %260 = vmatprep.subr.mxu0 0.0
  %v261 = vand.u32 %v32, 4294901760
  %262 = vmatpush1.msra.mxu0 %v261
  %263 = vmatprep.subr.mxu0 0.0
  %264 = vmatpush1.msra.mxu0 0.0
  %265 = vmatprep.subr.mxu0 0.0
  %266 = vmatpush1.msra.mxu0 0.0
  %267 = vmatprep.subr.mxu0 0.0
  %268 = vmatpush1.msra.mxu0 0.0
  %269 = vmatprep.subr.mxu0 0.0
  %270 = vmatpush1.msra.mxu0 0.0
  %271 = vmatprep.subr.mxu0 0.0
  %272 = vmatpush1.msra.mxu0 0.0
  %273 = vmatprep.subr.mxu0 0.0
  %274 = vmatpush1.msra.mxu0 0.0
  %275 = vmatprep.subr.mxu0 0.0
  %276 = vmatpush1.msra.mxu0 0.0
  %277 = vmatprep.subr.mxu0 0.0
  %278 = vmatpush1.msra.mxu0 0.0
  %279 = vmatprep.subr.mxu0 0.0
  %280 = vmatpush1.msra.mxu0 0.0
  %281 = vmatprep.subr.mxu0 0.0
  %282 = vmatpush1.msra.mxu0 0.0
  %283 = vmatprep.subr.mxu0 0.0
  %284 = vmatpush1.msra.mxu0 0.0
  %285 = vmatprep.subr.mxu0 0.0
  %286 = vmatpush1.msra.mxu0 0.0
  %287 = vmatprep.subr.mxu0 0.0
  %288 = vmatpush1.msra.mxu0 0.0
  %289 = vmatprep.subr.mxu0 0.0
  %290 = vmatpush1.msra.mxu0 0.0
  %291 = vmatprep.subr.mxu0 0.0
  %292 = vmatpush1.msra.mxu0 0.0
  %293 = vmatprep.subr.mxu0 0.0
  %294 = vmatpush1.msra.mxu0 0.0
  %295 = vmatprep.subr.mxu0 0.0
  %296 = vmatpush1.msra.mxu0 0.0
  %297 = vmatprep.subr.mxu0 0.0
  %298 = vmatpush1.msra.mxu0 0.0
  %299 = vmatprep.subr.mxu0 0.0
  %300 = vmatpush1.msra.mxu0 0.0
  %301 = vmatprep.subr.mxu0 0.0
  %302 = vmatpush1.msra.mxu0 0.0
  %303 = vmatprep.subr.mxu0 0.0
  %304 = vmatpush1.msra.mxu0 0.0
  %305 = vmatprep.subr.mxu0 0.0
  %306 = vmatpush1.msra.mxu0 0.0
  %307 = vmatprep.subr.mxu0 0.0
  %308 = vmatpush1.msra.mxu0 0.0
  %309 = vmatprep.subr.mxu0 0.0
  %310 = vmatpush1.msra.mxu0 0.0
  %311 = vmatprep.subr.mxu0 0.0
  %312 = vmatpush1.msra.mxu0 0.0
  %313 = vmatprep.subr.mxu0 0.0
  %314 = vmatpush1.msra.mxu0 0.0
  %315 = vmatprep.subr.mxu0 0.0
  %316 = vmatpush1.msra.mxu0 0.0
  %317 = vmatprep.subr.mxu0 0.0
  %318 = vmatpush1.msra.mxu0 0.0
  %319 = vmatprep.subr.mxu0 0.0
  %320 = vmatpush1.msra.mxu0 0.0
  %321 = vmatprep.subr.mxu0 0.0
  %322 = vmatpush1.msra.mxu0 0.0
  %323 = vmatprep.subr.mxu0 0.0
  %324 = vmatpush1.msra.mxu0 0.0
  %325 = vmatprep.mubr.f32.mxu0 0.0
  %v326 = vand.u32 %v28, 4294901760
  %v327 = vsub.f32 %v28, %v326
  %v328 = vand.u32 %v327, 4294901760
  %329 = vmatmul.mubr.f32.gmra.mrb[0].mxu0 %v328
  %v330 = vpop.f32.mrb[0].mxu0
  %v331 = vadd.f32 %v257, %v330
  %v332 = vpop.f32.mrb[0].mxu0
  %333 = vdwg.mxu0
  %334 = vmatprep.subr.mxu0 0.0
  %v335 = vand.u32 %v32, 4294901760
  %v336 = vsub.f32 %v32, %v335
  %v337 = vand.u32 %v336, 4294901760
  %338 = vmatpush1.msra.mxu0 %v337
  %339 = vmatprep.subr.mxu0 0.0
  %340 = vmatpush1.msra.mxu0 0.0
  %341 = vmatprep.subr.mxu0 0.0
  %342 = vmatpush1.msra.mxu0 0.0
  %343 = vmatprep.subr.mxu0 0.0
  %344 = vmatpush1.msra.mxu0 0.0
  %345 = vmatprep.subr.mxu0 0.0
  %346 = vmatpush1.msra.mxu0 0.0
  %347 = vmatprep.subr.mxu0 0.0
  %348 = vmatpush1.msra.mxu0 0.0
  %349 = vmatprep.subr.mxu0 0.0
  %350 = vmatpush1.msra.mxu0 0.0
  %351 = vmatprep.subr.mxu0 0.0
  %352 = vmatpush1.msra.mxu0 0.0
  %353 = vmatprep.subr.mxu0 0.0
  %354 = vmatpush1.msra.mxu0 0.0
  %355 = vmatprep.subr.mxu0 0.0
  %356 = vmatpush1.msra.mxu0 0.0
  %357 = vmatprep.subr.mxu0 0.0
  %358 = vmatpush1.msra.mxu0 0.0
  %359 = vmatprep.subr.mxu0 0.0
  %360 = vmatpush1.msra.mxu0 0.0
  %361 = vmatprep.subr.mxu0 0.0
  %362 = vmatpush1.msra.mxu0 0.0
  %363 = vmatprep.subr.mxu0 0.0
  %364 = vmatpush1.msra.mxu0 0.0
  %365 = vmatprep.subr.mxu0 0.0
  %366 = vmatpush1.msra.mxu0 0.0
  %367 = vmatprep.subr.mxu0 0.0
  %368 = vmatpush1.msra.mxu0 0.0
  %369 = vmatprep.subr.mxu0 0.0
  %370 = vmatpush1.msra.mxu0 0.0
  %371 = vmatprep.subr.mxu0 0.0
  %372 = vmatpush1.msra.mxu0 0.0
  %373 = vmatprep.subr.mxu0 0.0
  %374 = vmatpush1.msra.mxu0 0.0
  %375 = vmatprep.subr.mxu0 0.0
  %376 = vmatpush1.msra.mxu0 0.0
  %377 = vmatprep.subr.mxu0 0.0
  %378 = vmatpush1.msra.mxu0 0.0
  %379 = vmatprep.subr.mxu0 0.0
  %380 = vmatpush1.msra.mxu0 0.0
  %381 = vmatprep.subr.mxu0 0.0
  %382 = vmatpush1.msra.mxu0 0.0
  %383 = vmatprep.subr.mxu0 0.0
  %384 = vmatpush1.msra.mxu0 0.0
  %385 = vmatprep.subr.mxu0 0.0
  %386 = vmatpush1.msra.mxu0 0.0
  %387 = vmatprep.subr.mxu0 0.0
  %388 = vmatpush1.msra.mxu0 0.0
  %389 = vmatprep.subr.mxu0 0.0
  %390 = vmatpush1.msra.mxu0 0.0
  %391 = vmatprep.subr.mxu0 0.0
  %392 = vmatpush1.msra.mxu0 0.0
  %393 = vmatprep.subr.mxu0 0.0
  %394 = vmatpush1.msra.mxu0 0.0
  %395 = vmatprep.subr.mxu0 0.0
  %396 = vmatpush1.msra.mxu0 0.0
  %397 = vmatprep.subr.mxu0 0.0
  %398 = vmatpush1.msra.mxu0 0.0
  %399 = vmatprep.subr.mxu0 0.0
  %400 = vmatpush1.msra.mxu0 0.0
  %401 = vmatprep.mubr.f32.mxu0 0.0
  %v402 = vand.u32 %v28, 4294901760
  %403 = vmatmul.mubr.f32.gmra.mrb[0].mxu0 %v402
  %v404 = vpop.f32.mrb[0].mxu0
  %v405 = vadd.f32 %v331, %v404
  %v406 = vpop.f32.mrb[0].mxu0
  %407 = vdwg.mxu0
  %408 = vmatprep.subr.mxu0 0.0
  %v409 = vand.u32 %v32, 4294901760
  %410 = vmatpush1.msra.mxu0 %v409
  %411 = vmatprep.subr.mxu0 0.0
  %412 = vmatpush1.msra.mxu0 0.0
  %413 = vmatprep.subr.mxu0 0.0
  %414 = vmatpush1.msra.mxu0 0.0
  %415 = vmatprep.subr.mxu0 0.0
  %416 = vmatpush1.msra.mxu0 0.0
  %417 = vmatprep.subr.mxu0 0.0
  %418 = vmatpush1.msra.mxu0 0.0
  %419 = vmatprep.subr.mxu0 0.0
  %420 = vmatpush1.msra.mxu0 0.0
  %421 = vmatprep.subr.mxu0 0.0
  %422 = vmatpush1.msra.mxu0 0.0
  %423 = vmatprep.subr.mxu0 0.0
  %424 = vmatpush1.msra.mxu0 0.0
  %425 = vmatprep.subr.mxu0 0.0
  %426 = vmatpush1.msra.mxu0 0.0
  %427 = vmatprep.subr.mxu0 0.0
  %428 = vmatpush1.msra.mxu0 0.0
  %429 = vmatprep.subr.mxu0 0.0
  %430 = vmatpush1.msra.mxu0 0.0
  %431 = vmatprep.subr.mxu0 0.0
  %432 = vmatpush1.msra.mxu0 0.0
  %433 = vmatprep.subr.mxu0 0.0
  %434 = vmatpush1.msra.mxu0 0.0
  %435 = vmatprep.subr.mxu0 0.0
  %436 = vmatpush1.msra.mxu0 0.0
  %437 = vmatprep.subr.mxu0 0.0
  %438 = vmatpush1.msra.mxu0 0.0
  %439 = vmatprep.subr.mxu0 0.0
  %440 = vmatpush1.msra.mxu0 0.0
  %441 = vmatprep.subr.mxu0 0.0
  %442 = vmatpush1.msra.mxu0 0.0
  %443 = vmatprep.subr.mxu0 0.0
  %444 = vmatpush1.msra.mxu0 0.0
  %445 = vmatprep.subr.mxu0 0.0
  %446 = vmatpush1.msra.mxu0 0.0
  %447 = vmatprep.subr.mxu0 0.0
  %448 = vmatpush1.msra.mxu0 0.0
  %449 = vmatprep.subr.mxu0 0.0
  %450 = vmatpush1.msra.mxu0 0.0
  %451 = vmatprep.subr.mxu0 0.0
  %452 = vmatpush1.msra.mxu0 0.0
  %453 = vmatprep.subr.mxu0 0.0
  %454 = vmatpush1.msra.mxu0 0.0
  %455 = vmatprep.subr.mxu0 0.0
  %456 = vmatpush1.msra.mxu0 0.0
  %457 = vmatprep.subr.mxu0 0.0
  %458 = vmatpush1.msra.mxu0 0.0
  %459 = vmatprep.subr.mxu0 0.0
  %460 = vmatpush1.msra.mxu0 0.0
  %461 = vmatprep.subr.mxu0 0.0
  %462 = vmatpush1.msra.mxu0 0.0
  %463 = vmatprep.subr.mxu0 0.0
  %464 = vmatpush1.msra.mxu0 0.0
  %465 = vmatprep.subr.mxu0 0.0
  %466 = vmatpush1.msra.mxu0 0.0
  %467 = vmatprep.subr.mxu0 0.0
  %468 = vmatpush1.msra.mxu0 0.0
  %469 = vmatprep.subr.mxu0 0.0
  %470 = vmatpush1.msra.mxu0 0.0
  %471 = vmatprep.subr.mxu0 0.0
  %472 = vmatpush1.msra.mxu0 0.0
  %473 = vmatprep.mubr.f32.mxu0 0.0
  %v474 = vand.u32 %v28, 4294901760
  %475 = vmatmul.mubr.f32.gmra.mrb[0].mxu0 %v474
  %v476 = vpop.f32.mrb[0].mxu0
  %v477 = vadd.f32 %v405, %v476
  %v478 = vpop.f32.mrb[0].mxu0
  %479 = vdwg.mxu0
  %v480 = vld [vmem:[%s2] sm:$0x1]
  %v482 = vlaneseq
  %v483 = vshrl.u32 %v482, 7
  %v484 = vsub.s32 0, %v483
  %v485 = vrot.slane %v480, %v484
  %vm487 = vcmp.gt.f32.partialorder %v477, %v485
  %v488 = vld [vmem:[%s3] sm:$0x1]
  %v490 = vlaneseq
  %v491 = vshrl.u32 %v490, 7
  %v492 = vsub.s32 0, %v491
  %v493 = vrot.slane %v488, %v492
  %vm495 = vcmp.le.f32.partialorder %v477, %v493
  %vm496 = vmand %vm487, %vm495
  %v497 = vsel %vm496, 1, 0
  %v498 = vcvt.s32.f32 %v497
  %v499 = vld [vmem:[%s4] sm:$0xff]
  %v500 = vld [vmem:[%s4 + $0x8] sm:$0xff]
  %v501 = vld [vmem:[%s4 + $0x10] sm:$0xff]
  %v502 = vld [vmem:[%s4 + $0x18] sm:$0xff]
  %v503 = vld [vmem:[%s4 + $0x20] sm:$0xff]
  %v504 = vld [vmem:[%s4 + $0x28] sm:$0xff]
  %v505 = vld [vmem:[%s4 + $0x30] sm:$0xff]
  %v506 = vld [vmem:[%s4 + $0x38] sm:$0xff]
  %vm507 = vcmask 523264
  %v509 = vsel %vm507, %v498, 0
  %511 = vmatprep.subr.mxu0 0.0
  %v512 = vand.u32 %v499, 4294901760
  %513 = vmatpush1.msra.mxu0 %v512
  %514 = vmatprep.subr.mxu0 0.0
  %v515 = vand.u32 %v500, 4294901760
  %516 = vmatpush1.msra.mxu0 %v515
  %517 = vmatprep.subr.mxu0 0.0
  %v518 = vand.u32 %v501, 4294901760
  %519 = vmatpush1.msra.mxu0 %v518
  %520 = vmatprep.subr.mxu0 0.0
  %v521 = vand.u32 %v502, 4294901760
  %522 = vmatpush1.msra.mxu0 %v521
  %523 = vmatprep.subr.mxu0 0.0
  %v524 = vand.u32 %v503, 4294901760
  %525 = vmatpush1.msra.mxu0 %v524
  %526 = vmatprep.subr.mxu0 0.0
  %v527 = vand.u32 %v504, 4294901760
  %528 = vmatpush1.msra.mxu0 %v527
  %529 = vmatprep.subr.mxu0 0.0
  %v530 = vand.u32 %v505, 4294901760
  %531 = vmatpush1.msra.mxu0 %v530
  %532 = vmatprep.subr.mxu0 0.0
  %v533 = vand.u32 %v506, 4294901760
  %534 = vmatpush1.msra.mxu0 %v533
  %535 = vmatprep.subr.mxu0 0.0
  %536 = vmatpush1.msra.mxu0 0.0
  %537 = vmatprep.subr.mxu0 0.0
  %538 = vmatpush1.msra.mxu0 0.0
  %539 = vmatprep.subr.mxu0 0.0
  %540 = vmatpush1.msra.mxu0 0.0
  %541 = vmatprep.subr.mxu0 0.0
  %542 = vmatpush1.msra.mxu0 0.0
  %543 = vmatprep.subr.mxu0 0.0
  %544 = vmatpush1.msra.mxu0 0.0
  %545 = vmatprep.subr.mxu0 0.0
  %546 = vmatpush1.msra.mxu0 0.0
  %547 = vmatprep.subr.mxu0 0.0
  %548 = vmatpush1.msra.mxu0 0.0
  %549 = vmatprep.subr.mxu0 0.0
  %550 = vmatpush1.msra.mxu0 0.0
  %551 = vmatprep.subr.mxu0 0.0
  %552 = vmatpush1.msra.mxu0 0.0
  %553 = vmatprep.subr.mxu0 0.0
  %554 = vmatpush1.msra.mxu0 0.0
  %555 = vmatprep.subr.mxu0 0.0
  %556 = vmatpush1.msra.mxu0 0.0
  %557 = vmatprep.subr.mxu0 0.0
  %558 = vmatpush1.msra.mxu0 0.0
  %559 = vmatprep.subr.mxu0 0.0
  %560 = vmatpush1.msra.mxu0 0.0
  %561 = vmatprep.subr.mxu0 0.0
  %562 = vmatpush1.msra.mxu0 0.0
  %563 = vmatprep.subr.mxu0 0.0
  %564 = vmatpush1.msra.mxu0 0.0
  %565 = vmatprep.subr.mxu0 0.0
  %566 = vmatpush1.msra.mxu0 0.0
  %567 = vmatprep.subr.mxu0 0.0
  %568 = vmatpush1.msra.mxu0 0.0
  %569 = vmatprep.subr.mxu0 0.0
  %570 = vmatpush1.msra.mxu0 0.0
  %571 = vmatprep.subr.mxu0 0.0
  %572 = vmatpush1.msra.mxu0 0.0
  %573 = vmatprep.subr.mxu0 0.0
  %574 = vmatpush1.msra.mxu0 0.0
  %575 = vmatprep.subr.mxu0 0.0
  %576 = vmatpush1.msra.mxu0 0.0
  %577 = vmatprep.subr.mxu0 0.0
  %578 = vmatpush1.msra.mxu0 0.0
  %579 = vmatprep.subr.mxu0 0.0
  %580 = vmatpush1.msra.mxu0 0.0
  %581 = vmatprep.subr.mxu0 0.0
  %582 = vmatpush1.msra.mxu0 0.0
  %583 = vmatprep.mubr.f32.mxu0 0.0
  %v584 = vand.u32 %v509, 4294901760
  %v585 = vsub.f32 %v509, %v584
  %v586 = vand.u32 %v585, 4294901760
  %v587 = vsub.f32 %v585, %v586
  %v588 = vand.u32 %v587, 4294901760
  %589 = vmatmul.mubr.f32.gmra.mrb[0].mxu0 %v588
  %v590 = vpop.f32.mrb[0].mxu0
  %v591 = vadd.f32 0.0, %v590
  %v592 = vpop.f32.mrb[0].mxu0
  %593 = vdwg.mxu0
  %594 = vmatprep.subr.mxu0 0.0
  %v595 = vand.u32 %v499, 4294901760
  %v596 = vsub.f32 %v499, %v595
  %v597 = vand.u32 %v596, 4294901760
  %v598 = vsub.f32 %v596, %v597
  %v599 = vand.u32 %v598, 4294901760
  %600 = vmatpush1.msra.mxu0 %v599
  %601 = vmatprep.subr.mxu0 0.0
  %v602 = vand.u32 %v500, 4294901760
  %v603 = vsub.f32 %v500, %v602
  %v604 = vand.u32 %v603, 4294901760
  %v605 = vsub.f32 %v603, %v604
  %v606 = vand.u32 %v605, 4294901760
  %607 = vmatpush1.msra.mxu0 %v606
  %608 = vmatprep.subr.mxu0 0.0
  %v609 = vand.u32 %v501, 4294901760
  %v610 = vsub.f32 %v501, %v609
  %v611 = vand.u32 %v610, 4294901760
  %v612 = vsub.f32 %v610, %v611
  %v613 = vand.u32 %v612, 4294901760
  %614 = vmatpush1.msra.mxu0 %v613
  %615 = vmatprep.subr.mxu0 0.0
  %v616 = vand.u32 %v502, 4294901760
  %v617 = vsub.f32 %v502, %v616
  %v618 = vand.u32 %v617, 4294901760
  %v619 = vsub.f32 %v617, %v618
  %v620 = vand.u32 %v619, 4294901760
  %621 = vmatpush1.msra.mxu0 %v620
  %622 = vmatprep.subr.mxu0 0.0
  %v623 = vand.u32 %v503, 4294901760
  %v624 = vsub.f32 %v503, %v623
  %v625 = vand.u32 %v624, 4294901760
  %v626 = vsub.f32 %v624, %v625
  %v627 = vand.u32 %v626, 4294901760
  %628 = vmatpush1.msra.mxu0 %v627
  %629 = vmatprep.subr.mxu0 0.0
  %v630 = vand.u32 %v504, 4294901760
  %v631 = vsub.f32 %v504, %v630
  %v632 = vand.u32 %v631, 4294901760
  %v633 = vsub.f32 %v631, %v632
  %v634 = vand.u32 %v633, 4294901760
  %635 = vmatpush1.msra.mxu0 %v634
  %636 = vmatprep.subr.mxu0 0.0
  %v637 = vand.u32 %v505, 4294901760
  %v638 = vsub.f32 %v505, %v637
  %v639 = vand.u32 %v638, 4294901760
  %v640 = vsub.f32 %v638, %v639
  %v641 = vand.u32 %v640, 4294901760
  %642 = vmatpush1.msra.mxu0 %v641
  %643 = vmatprep.subr.mxu0 0.0
  %v644 = vand.u32 %v506, 4294901760
  %v645 = vsub.f32 %v506, %v644
  %v646 = vand.u32 %v645, 4294901760
  %v647 = vsub.f32 %v645, %v646
  %v648 = vand.u32 %v647, 4294901760
  %649 = vmatpush1.msra.mxu0 %v648
  %650 = vmatprep.subr.mxu0 0.0
  %651 = vmatpush1.msra.mxu0 0.0
  %652 = vmatprep.subr.mxu0 0.0
  %653 = vmatpush1.msra.mxu0 0.0
  %654 = vmatprep.subr.mxu0 0.0
  %655 = vmatpush1.msra.mxu0 0.0
  %656 = vmatprep.subr.mxu0 0.0
  %657 = vmatpush1.msra.mxu0 0.0
  %658 = vmatprep.subr.mxu0 0.0
  %659 = vmatpush1.msra.mxu0 0.0
  %660 = vmatprep.subr.mxu0 0.0
  %661 = vmatpush1.msra.mxu0 0.0
  %662 = vmatprep.subr.mxu0 0.0
  %663 = vmatpush1.msra.mxu0 0.0
  %664 = vmatprep.subr.mxu0 0.0
  %665 = vmatpush1.msra.mxu0 0.0
  %666 = vmatprep.subr.mxu0 0.0
  %667 = vmatpush1.msra.mxu0 0.0
  %668 = vmatprep.subr.mxu0 0.0
  %669 = vmatpush1.msra.mxu0 0.0
  %670 = vmatprep.subr.mxu0 0.0
  %671 = vmatpush1.msra.mxu0 0.0
  %672 = vmatprep.subr.mxu0 0.0
  %673 = vmatpush1.msra.mxu0 0.0
  %674 = vmatprep.subr.mxu0 0.0
  %675 = vmatpush1.msra.mxu0 0.0
  %676 = vmatprep.subr.mxu0 0.0
  %677 = vmatpush1.msra.mxu0 0.0
  %678 = vmatprep.subr.mxu0 0.0
  %679 = vmatpush1.msra.mxu0 0.0
  %680 = vmatprep.subr.mxu0 0.0
  %681 = vmatpush1.msra.mxu0 0.0
  %682 = vmatprep.subr.mxu0 0.0
  %683 = vmatpush1.msra.mxu0 0.0
  %684 = vmatprep.subr.mxu0 0.0
  %685 = vmatpush1.msra.mxu0 0.0
  %686 = vmatprep.subr.mxu0 0.0
  %687 = vmatpush1.msra.mxu0 0.0
  %688 = vmatprep.subr.mxu0 0.0
  %689 = vmatpush1.msra.mxu0 0.0
  %690 = vmatprep.subr.mxu0 0.0
  %691 = vmatpush1.msra.mxu0 0.0
  %692 = vmatprep.subr.mxu0 0.0
  %693 = vmatpush1.msra.mxu0 0.0
  %694 = vmatprep.subr.mxu0 0.0
  %695 = vmatpush1.msra.mxu0 0.0
  %696 = vmatprep.subr.mxu0 0.0
  %697 = vmatpush1.msra.mxu0 0.0
  %698 = vmatprep.mubr.f32.mxu0 0.0
  %v699 = vand.u32 %v509, 4294901760
  %700 = vmatmul.mubr.f32.gmra.mrb[0].mxu0 %v699
  %v701 = vpop.f32.mrb[0].mxu0
  %v702 = vadd.f32 %v591, %v701
  %v703 = vpop.f32.mrb[0].mxu0
  %704 = vdwg.mxu0
  %705 = vmatprep.subr.mxu0 0.0
  %v706 = vand.u32 %v499, 4294901760
  %v707 = vsub.f32 %v499, %v706
  %708 = vmatpush1.msra.mxu0 %v707
  %709 = vmatprep.subr.mxu0 0.0
  %v710 = vand.u32 %v500, 4294901760
  %v711 = vsub.f32 %v500, %v710
  %712 = vmatpush1.msra.mxu0 %v711
  %713 = vmatprep.subr.mxu0 0.0
  %v714 = vand.u32 %v501, 4294901760
  %v715 = vsub.f32 %v501, %v714
  %716 = vmatpush1.msra.mxu0 %v715
  %717 = vmatprep.subr.mxu0 0.0
  %v718 = vand.u32 %v502, 4294901760
  %v719 = vsub.f32 %v502, %v718
  %720 = vmatpush1.msra.mxu0 %v719
  %721 = vmatprep.subr.mxu0 0.0
  %v722 = vand.u32 %v503, 4294901760
  %v723 = vsub.f32 %v503, %v722
  %724 = vmatpush1.msra.mxu0 %v723
  %725 = vmatprep.subr.mxu0 0.0
  %v726 = vand.u32 %v504, 4294901760
  %v727 = vsub.f32 %v504, %v726
  %728 = vmatpush1.msra.mxu0 %v727
  %729 = vmatprep.subr.mxu0 0.0
  %v730 = vand.u32 %v505, 4294901760
  %v731 = vsub.f32 %v505, %v730
  %732 = vmatpush1.msra.mxu0 %v731
  %733 = vmatprep.subr.mxu0 0.0
  %v734 = vand.u32 %v506, 4294901760
  %v735 = vsub.f32 %v506, %v734
  %736 = vmatpush1.msra.mxu0 %v735
  %737 = vmatprep.subr.mxu0 0.0
  %738 = vmatpush1.msra.mxu0 0.0
  %739 = vmatprep.subr.mxu0 0.0
  %740 = vmatpush1.msra.mxu0 0.0
  %741 = vmatprep.subr.mxu0 0.0
  %742 = vmatpush1.msra.mxu0 0.0
  %743 = vmatprep.subr.mxu0 0.0
  %744 = vmatpush1.msra.mxu0 0.0
  %745 = vmatprep.subr.mxu0 0.0
  %746 = vmatpush1.msra.mxu0 0.0
  %747 = vmatprep.subr.mxu0 0.0
  %748 = vmatpush1.msra.mxu0 0.0
  %749 = vmatprep.subr.mxu0 0.0
  %750 = vmatpush1.msra.mxu0 0.0
  %751 = vmatprep.subr.mxu0 0.0
  %752 = vmatpush1.msra.mxu0 0.0
  %753 = vmatprep.subr.mxu0 0.0
  %754 = vmatpush1.msra.mxu0 0.0
  %755 = vmatprep.subr.mxu0 0.0
  %756 = vmatpush1.msra.mxu0 0.0
  %757 = vmatprep.subr.mxu0 0.0
  %758 = vmatpush1.msra.mxu0 0.0
  %759 = vmatprep.subr.mxu0 0.0
  %760 = vmatpush1.msra.mxu0 0.0
  %761 = vmatprep.subr.mxu0 0.0
  %762 = vmatpush1.msra.mxu0 0.0
  %763 = vmatprep.subr.mxu0 0.0
  %764 = vmatpush1.msra.mxu0 0.0
  %765 = vmatprep.subr.mxu0 0.0
  %766 = vmatpush1.msra.mxu0 0.0
  %767 = vmatprep.subr.mxu0 0.0
  %768 = vmatpush1.msra.mxu0 0.0
  %769 = vmatprep.subr.mxu0 0.0
  %770 = vmatpush1.msra.mxu0 0.0
  %771 = vmatprep.subr.mxu0 0.0
  %772 = vmatpush1.msra.mxu0 0.0
  %773 = vmatprep.subr.mxu0 0.0
  %774 = vmatpush1.msra.mxu0 0.0
  %775 = vmatprep.subr.mxu0 0.0
  %776 = vmatpush1.msra.mxu0 0.0
  %777 = vmatprep.subr.mxu0 0.0
  %778 = vmatpush1.msra.mxu0 0.0
  %779 = vmatprep.subr.mxu0 0.0
  %780 = vmatpush1.msra.mxu0 0.0
  %781 = vmatprep.subr.mxu0 0.0
  %782 = vmatpush1.msra.mxu0 0.0
  %783 = vmatprep.subr.mxu0 0.0
  %784 = vmatpush1.msra.mxu0 0.0
  %785 = vmatprep.mubr.f32.mxu0 0.0
  %v786 = vand.u32 %v509, 4294901760
  %v787 = vsub.f32 %v509, %v786
  %788 = vmatmul.mubr.f32.gmra.mrb[0].mxu0 %v787
  %v789 = vpop.f32.mrb[0].mxu0
  %v790 = vadd.f32 %v702, %v789
  %v791 = vpop.f32.mrb[0].mxu0
  %792 = vdwg.mxu0
  %793 = vmatprep.subr.mxu0 0.0
  %v794 = vand.u32 %v499, 4294901760
  %795 = vmatpush1.msra.mxu0 %v794
  %796 = vmatprep.subr.mxu0 0.0
  %v797 = vand.u32 %v500, 4294901760
  %798 = vmatpush1.msra.mxu0 %v797
  %799 = vmatprep.subr.mxu0 0.0
  %v800 = vand.u32 %v501, 4294901760
  %801 = vmatpush1.msra.mxu0 %v800
  %802 = vmatprep.subr.mxu0 0.0
  %v803 = vand.u32 %v502, 4294901760
  %804 = vmatpush1.msra.mxu0 %v803
  %805 = vmatprep.subr.mxu0 0.0
  %v806 = vand.u32 %v503, 4294901760
  %807 = vmatpush1.msra.mxu0 %v806
  %808 = vmatprep.subr.mxu0 0.0
  %v809 = vand.u32 %v504, 4294901760
  %810 = vmatpush1.msra.mxu0 %v809
  %811 = vmatprep.subr.mxu0 0.0
  %v812 = vand.u32 %v505, 4294901760
  %813 = vmatpush1.msra.mxu0 %v812
  %814 = vmatprep.subr.mxu0 0.0
  %v815 = vand.u32 %v506, 4294901760
  %816 = vmatpush1.msra.mxu0 %v815
  %817 = vmatprep.subr.mxu0 0.0
  %818 = vmatpush1.msra.mxu0 0.0
  %819 = vmatprep.subr.mxu0 0.0
  %820 = vmatpush1.msra.mxu0 0.0
  %821 = vmatprep.subr.mxu0 0.0
  %822 = vmatpush1.msra.mxu0 0.0
  %823 = vmatprep.subr.mxu0 0.0
  %824 = vmatpush1.msra.mxu0 0.0
  %825 = vmatprep.subr.mxu0 0.0
  %826 = vmatpush1.msra.mxu0 0.0
  %827 = vmatprep.subr.mxu0 0.0
  %828 = vmatpush1.msra.mxu0 0.0
  %829 = vmatprep.subr.mxu0 0.0
  %830 = vmatpush1.msra.mxu0 0.0
  %831 = vmatprep.subr.mxu0 0.0
  %832 = vmatpush1.msra.mxu0 0.0
  %833 = vmatprep.subr.mxu0 0.0
  %834 = vmatpush1.msra.mxu0 0.0
  %835 = vmatprep.subr.mxu0 0.0
  %836 = vmatpush1.msra.mxu0 0.0
  %837 = vmatprep.subr.mxu0 0.0
  %838 = vmatpush1.msra.mxu0 0.0
  %839 = vmatprep.subr.mxu0 0.0
  %840 = vmatpush1.msra.mxu0 0.0
  %841 = vmatprep.subr.mxu0 0.0
  %842 = vmatpush1.msra.mxu0 0.0
  %843 = vmatprep.subr.mxu0 0.0
  %844 = vmatpush1.msra.mxu0 0.0
  %845 = vmatprep.subr.mxu0 0.0
  %846 = vmatpush1.msra.mxu0 0.0
  %847 = vmatprep.subr.mxu0 0.0
  %848 = vmatpush1.msra.mxu0 0.0
  %849 = vmatprep.subr.mxu0 0.0
  %850 = vmatpush1.msra.mxu0 0.0
  %851 = vmatprep.subr.mxu0 0.0
  %852 = vmatpush1.msra.mxu0 0.0
  %853 = vmatprep.subr.mxu0 0.0
  %854 = vmatpush1.msra.mxu0 0.0
  %855 = vmatprep.subr.mxu0 0.0
  %856 = vmatpush1.msra.mxu0 0.0
  %857 = vmatprep.subr.mxu0 0.0
  %858 = vmatpush1.msra.mxu0 0.0
  %859 = vmatprep.subr.mxu0 0.0
  %860 = vmatpush1.msra.mxu0 0.0
  %861 = vmatprep.subr.mxu0 0.0
  %862 = vmatpush1.msra.mxu0 0.0
  %863 = vmatprep.subr.mxu0 0.0
  %864 = vmatpush1.msra.mxu0 0.0
  %865 = vmatprep.mubr.f32.mxu0 0.0
  %v866 = vand.u32 %v509, 4294901760
  %v867 = vsub.f32 %v509, %v866
  %v868 = vand.u32 %v867, 4294901760
  %869 = vmatmul.mubr.f32.gmra.mrb[0].mxu0 %v868
  %v870 = vpop.f32.mrb[0].mxu0
  %v871 = vadd.f32 %v790, %v870
  %v872 = vpop.f32.mrb[0].mxu0
  %873 = vdwg.mxu0
  %874 = vmatprep.subr.mxu0 0.0
  %v875 = vand.u32 %v499, 4294901760
  %v876 = vsub.f32 %v499, %v875
  %v877 = vand.u32 %v876, 4294901760
  %878 = vmatpush1.msra.mxu0 %v877
  %879 = vmatprep.subr.mxu0 0.0
  %v880 = vand.u32 %v500, 4294901760
  %v881 = vsub.f32 %v500, %v880
  %v882 = vand.u32 %v881, 4294901760
  %883 = vmatpush1.msra.mxu0 %v882
  %884 = vmatprep.subr.mxu0 0.0
  %v885 = vand.u32 %v501, 4294901760
  %v886 = vsub.f32 %v501, %v885
  %v887 = vand.u32 %v886, 4294901760
  %888 = vmatpush1.msra.mxu0 %v887
  %889 = vmatprep.subr.mxu0 0.0
  %v890 = vand.u32 %v502, 4294901760
  %v891 = vsub.f32 %v502, %v890
  %v892 = vand.u32 %v891, 4294901760
  %893 = vmatpush1.msra.mxu0 %v892
  %894 = vmatprep.subr.mxu0 0.0
  %v895 = vand.u32 %v503, 4294901760
  %v896 = vsub.f32 %v503, %v895
  %v897 = vand.u32 %v896, 4294901760
  %898 = vmatpush1.msra.mxu0 %v897
  %899 = vmatprep.subr.mxu0 0.0
  %v900 = vand.u32 %v504, 4294901760
  %v901 = vsub.f32 %v504, %v900
  %v902 = vand.u32 %v901, 4294901760
  %903 = vmatpush1.msra.mxu0 %v902
  %904 = vmatprep.subr.mxu0 0.0
  %v905 = vand.u32 %v505, 4294901760
  %v906 = vsub.f32 %v505, %v905
  %v907 = vand.u32 %v906, 4294901760
  %908 = vmatpush1.msra.mxu0 %v907
  %909 = vmatprep.subr.mxu0 0.0
  %v910 = vand.u32 %v506, 4294901760
  %v911 = vsub.f32 %v506, %v910
  %v912 = vand.u32 %v911, 4294901760
  %913 = vmatpush1.msra.mxu0 %v912
  %914 = vmatprep.subr.mxu0 0.0
  %915 = vmatpush1.msra.mxu0 0.0
  %916 = vmatprep.subr.mxu0 0.0
  %917 = vmatpush1.msra.mxu0 0.0
  %918 = vmatprep.subr.mxu0 0.0
  %919 = vmatpush1.msra.mxu0 0.0
  %920 = vmatprep.subr.mxu0 0.0
  %921 = vmatpush1.msra.mxu0 0.0
  %922 = vmatprep.subr.mxu0 0.0
  %923 = vmatpush1.msra.mxu0 0.0
  %924 = vmatprep.subr.mxu0 0.0
  %925 = vmatpush1.msra.mxu0 0.0
  %926 = vmatprep.subr.mxu0 0.0
  %927 = vmatpush1.msra.mxu0 0.0
  %928 = vmatprep.subr.mxu0 0.0
  %929 = vmatpush1.msra.mxu0 0.0
  %930 = vmatprep.subr.mxu0 0.0
  %931 = vmatpush1.msra.mxu0 0.0
  %932 = vmatprep.subr.mxu0 0.0
  %933 = vmatpush1.msra.mxu0 0.0
  %934 = vmatprep.subr.mxu0 0.0
  %935 = vmatpush1.msra.mxu0 0.0
  %936 = vmatprep.subr.mxu0 0.0
  %937 = vmatpush1.msra.mxu0 0.0
  %938 = vmatprep.subr.mxu0 0.0
  %939 = vmatpush1.msra.mxu0 0.0
  %940 = vmatprep.subr.mxu0 0.0
  %941 = vmatpush1.msra.mxu0 0.0
  %942 = vmatprep.subr.mxu0 0.0
  %943 = vmatpush1.msra.mxu0 0.0
  %944 = vmatprep.subr.mxu0 0.0
  %945 = vmatpush1.msra.mxu0 0.0
  %946 = vmatprep.subr.mxu0 0.0
  %947 = vmatpush1.msra.mxu0 0.0
  %948 = vmatprep.subr.mxu0 0.0
  %949 = vmatpush1.msra.mxu0 0.0
  %950 = vmatprep.subr.mxu0 0.0
  %951 = vmatpush1.msra.mxu0 0.0
  %952 = vmatprep.subr.mxu0 0.0
  %953 = vmatpush1.msra.mxu0 0.0
  %954 = vmatprep.subr.mxu0 0.0
  %955 = vmatpush1.msra.mxu0 0.0
  %956 = vmatprep.subr.mxu0 0.0
  %957 = vmatpush1.msra.mxu0 0.0
  %958 = vmatprep.subr.mxu0 0.0
  %959 = vmatpush1.msra.mxu0 0.0
  %960 = vmatprep.subr.mxu0 0.0
  %961 = vmatpush1.msra.mxu0 0.0
  %962 = vmatprep.mubr.f32.mxu0 0.0
  %v963 = vand.u32 %v509, 4294901760
  %964 = vmatmul.mubr.f32.gmra.mrb[0].mxu0 %v963
  %v965 = vpop.f32.mrb[0].mxu0
  %v966 = vadd.f32 %v871, %v965
  %v967 = vpop.f32.mrb[0].mxu0
  %968 = vdwg.mxu0
  %969 = vmatprep.subr.mxu0 0.0
  %v970 = vand.u32 %v499, 4294901760
  %971 = vmatpush1.msra.mxu0 %v970
  %972 = vmatprep.subr.mxu0 0.0
  %v973 = vand.u32 %v500, 4294901760
  %974 = vmatpush1.msra.mxu0 %v973
  %975 = vmatprep.subr.mxu0 0.0
  %v976 = vand.u32 %v501, 4294901760
  %977 = vmatpush1.msra.mxu0 %v976
  %978 = vmatprep.subr.mxu0 0.0
  %v979 = vand.u32 %v502, 4294901760
  %980 = vmatpush1.msra.mxu0 %v979
  %981 = vmatprep.subr.mxu0 0.0
  %v982 = vand.u32 %v503, 4294901760
  %983 = vmatpush1.msra.mxu0 %v982
  %984 = vmatprep.subr.mxu0 0.0
  %v985 = vand.u32 %v504, 4294901760
  %986 = vmatpush1.msra.mxu0 %v985
  %987 = vmatprep.subr.mxu0 0.0
  %v988 = vand.u32 %v505, 4294901760
  %989 = vmatpush1.msra.mxu0 %v988
  %990 = vmatprep.subr.mxu0 0.0
  %v991 = vand.u32 %v506, 4294901760
  %992 = vmatpush1.msra.mxu0 %v991
  %993 = vmatprep.subr.mxu0 0.0
  %994 = vmatpush1.msra.mxu0 0.0
  %995 = vmatprep.subr.mxu0 0.0
  %996 = vmatpush1.msra.mxu0 0.0
  %997 = vmatprep.subr.mxu0 0.0
  %998 = vmatpush1.msra.mxu0 0.0
  %999 = vmatprep.subr.mxu0 0.0
  %1000 = vmatpush1.msra.mxu0 0.0
  %1001 = vmatprep.subr.mxu0 0.0
  %1002 = vmatpush1.msra.mxu0 0.0
  %1003 = vmatprep.subr.mxu0 0.0
  %1004 = vmatpush1.msra.mxu0 0.0
  %1005 = vmatprep.subr.mxu0 0.0
  %1006 = vmatpush1.msra.mxu0 0.0
  %1007 = vmatprep.subr.mxu0 0.0
  %1008 = vmatpush1.msra.mxu0 0.0
  %1009 = vmatprep.subr.mxu0 0.0
  %1010 = vmatpush1.msra.mxu0 0.0
  %1011 = vmatprep.subr.mxu0 0.0
  %1012 = vmatpush1.msra.mxu0 0.0
  %1013 = vmatprep.subr.mxu0 0.0
  %1014 = vmatpush1.msra.mxu0 0.0
  %1015 = vmatprep.subr.mxu0 0.0
  %1016 = vmatpush1.msra.mxu0 0.0
  %1017 = vmatprep.subr.mxu0 0.0
  %1018 = vmatpush1.msra.mxu0 0.0
  %1019 = vmatprep.subr.mxu0 0.0
  %1020 = vmatpush1.msra.mxu0 0.0
  %1021 = vmatprep.subr.mxu0 0.0
  %1022 = vmatpush1.msra.mxu0 0.0
  %1023 = vmatprep.subr.mxu0 0.0
  %1024 = vmatpush1.msra.mxu0 0.0
  %1025 = vmatprep.subr.mxu0 0.0
  %1026 = vmatpush1.msra.mxu0 0.0
  %1027 = vmatprep.subr.mxu0 0.0
  %1028 = vmatpush1.msra.mxu0 0.0
  %1029 = vmatprep.subr.mxu0 0.0
  %1030 = vmatpush1.msra.mxu0 0.0
  %1031 = vmatprep.subr.mxu0 0.0
  %1032 = vmatpush1.msra.mxu0 0.0
  %1033 = vmatprep.subr.mxu0 0.0
  %1034 = vmatpush1.msra.mxu0 0.0
  %1035 = vmatprep.subr.mxu0 0.0
  %1036 = vmatpush1.msra.mxu0 0.0
  %1037 = vmatprep.subr.mxu0 0.0
  %1038 = vmatpush1.msra.mxu0 0.0
  %1039 = vmatprep.subr.mxu0 0.0
  %1040 = vmatpush1.msra.mxu0 0.0
  %1041 = vmatprep.mubr.f32.mxu0 0.0
  %v1042 = vand.u32 %v509, 4294901760
  %1043 = vmatmul.mubr.f32.gmra.mrb[0].mxu0 %v1042
  %v1044 = vpop.f32.mrb[0].mxu0
  %v1045 = vadd.f32 %v966, %v1044
  %v1046 = vpop.f32.mrb[0].mxu0
  %1047 = vdwg.mxu0
  %1048 = vst [vmem:[%s5] sm:$0xff] %v1045
  // Predicated region
  $region22: #{learnable_interval_embedding.1} parent=0 // pred_check
    _
  $region23: #{learnable_interval_embedding.1} parent=0 // pred_check_branch
    %1050 = sbr.rel (0) target = $region25
  $region24: #{learnable_interval_embedding.1} parent=0 // pred_region
    _
  $region25: #{learnable_interval_embedding.1} parent=0 // pred_fallthru
    _
  // Predicated region
  $region26: #{learnable_interval_embedding.1} parent=0 // pred_check
    _
  $region27: #{learnable_interval_embedding.1} parent=0 // pred_check_branch
    %1052 = sbr.rel (0) target = $region29
  $region28: #{learnable_interval_embedding.1} parent=0 // pred_region
    _
  $region29: #{learnable_interval_embedding.1} parent=0 // pred_fallthru
    _

</llo_original>
